<compile_context>
chip_gen: v7x
topology: tpu7x:2x2x1
jax: 0.10.0
libtpu: 0.0.40
codegen_flags: <defaults>
</compile_context>

<pallas_src>
import jax
import jax.numpy as jnp
from jax.experimental import pallas as pl
from jax.experimental.pallas import tpu as pltpu


def _round_up(x, m):
    return ((x + m - 1) // m) * m


def _two_layer_kernel(x_ref, w1_ref, b1_ref, w2_ref, b2_ref, o_ref):
    # fc_1: [TM, DP] @ [DP, HP] on the MXU, f32 accumulation.
    h = jnp.dot(x_ref[...], w1_ref[...], preferred_element_type=jnp.float32)
    # Bias add in f32 on the VPU.
    h = h + b1_ref[...]
    # sigmoid(h) = 0.5 * tanh(0.5 * h) + 0.5 : one EUP push, exact.
    h = 0.5 * jnp.tanh(0.5 * h) + 0.5
    # out: [TM, HP] @ [HP, NP] on the MXU, f32 accumulation; lane-dense store.
    y = jnp.dot(h.astype(w2_ref.dtype), w2_ref[...],
                preferred_element_type=jnp.float32)
    o_ref[...] = (y + b2_ref[...]).astype(o_ref.dtype)


def prepare_two_layer_params(w1, b1, w2, b2, *, compute_dtype=jnp.bfloat16):
    """Pad weights/biases to lane-aligned shapes and cast ONCE at model init.

    w1: [D, H], b1: [H], w2: [H, 10], b2: [10] (stored [in, out] so the kernel
    computes x @ W, matching torch's Linear semantics).
    """
    D, H = w1.shape
    N = w2.shape[1]
    DP = _round_up(D, 128)
    HP = _round_up(H, 128)
    NP = _round_up(N, 128)
    w1p = (jnp.zeros((DP, HP), compute_dtype)
           .at[:D, :H].set(w1.astype(compute_dtype)))
    w2p = (jnp.zeros((HP, NP), compute_dtype)
           .at[:H, :N].set(w2.astype(compute_dtype)))
    # Biases stay f32: the bias add + sigmoid run in f32 (v5e has no bf16 VPU).
    b1p = jnp.zeros((1, HP), jnp.float32).at[0, :H].set(b1.astype(jnp.float32))
    b2p = jnp.zeros((1, NP), jnp.float32).at[0, :N].set(b2.astype(jnp.float32))
    return {"w1": w1p, "b1": b1p, "w2": w2p, "b2": b2p, "n_out": N}


# Conservative per-kernel VMEM budget: fits v7x's 64 MiB/TC with headroom and
# is far below v5e/v6e's 128 MiB.
_VMEM_TILE_BUDGET = 40 << 20


def two_layer_net_apply(params, x, *, block_m=512, out_dtype=jnp.float32):
    """Fused forward.  x: [B, ...] (flattened to [B, D]).  Returns [B, 10]."""
    w1p, b1p, w2p, b2p = params["w1"], params["b1"], params["w2"], params["b2"]
    N = params["n_out"]
    DP, HP = w1p.shape
    NP = w2p.shape[1]
    compute_dtype = w1p.dtype
    act_bytes = jnp.dtype(compute_dtype).itemsize
    out_bytes = jnp.dtype(out_dtype).itemsize

    B = x.shape[0]
    x2d = x.reshape(B, -1)                 # matches torch x.view(in_size, -1)
    D = x2d.shape[1]
    assert D <= DP, "input feature dim exceeds prepared weight shape"

    # Large batch tile (grid-step overhead ~0.35us dwarfs a 128-row tile's
    # work), rounded to 16 rows for bf16 sublane packing.  When B > block_m the
    # grid automatically has >= 2 steps, so the "parallel" axis can shard
    # across v7x's two TensorCores.
    TM = _round_up(min(block_m, B), 16)

    weight_bytes = (DP * HP + HP * NP) * act_bytes + (HP + NP) * 4

    def vmem_estimate(tm):
        return (2 * tm * DP * act_bytes          # double-buffered x tile
                + weight_bytes                   # single-buffered weights/biases
                + 2 * tm * NP * out_bytes)       # double-buffered out tile

    # Shrink the tile if the estimate blows the (v7x-safe) budget.
    # TODO(synk): for very large flattened inputs (DP >~ 16K) add a DP
    # reduction grid axis ("arbitrary", last) with an f32 accumulator scratch
    # instead of shrinking TM.
    while TM > 16 and vmem_estimate(TM) > _VMEM_TILE_BUDGET:
        TM = _round_up(TM // 2, 16)

    BP = _round_up(B, TM)

    if D == DP and B == BP:
        # Aligned fast path: no extra padding pass over x in HBM.
        xp = x2d.astype(compute_dtype)
    else:
        # Pad directly in the compute dtype (one extra pass, not two).
        xp = (jnp.zeros((BP, DP), compute_dtype)
              .at[:B, :D].set(x2d.astype(compute_dtype)))

    grid = (BP // TM,)

    cost = pl.CostEstimate(
        flops=2 * BP * DP * HP + 2 * BP * HP * NP,
        transcendentals=BP * HP,
        bytes_accessed=(BP * DP * act_bytes + weight_bytes + BP * NP * out_bytes),
    )

    vmem_limit = max(16 << 20,
                     min(int(vmem_estimate(TM) * 1.25) + (4 << 20), 64 << 20))

    resident = dict(pipeline_mode=pl.Buffered(1))   # fetched once, revisited

    out_padded = pl.pallas_call(
        _two_layer_kernel,
        out_shape=jax.ShapeDtypeStruct((BP, NP), out_dtype),
        grid=grid,
        in_specs=[
            # x: pipelined over the batch grid axis (prefetch i+1 / writeback i-1).
            pl.BlockSpec((TM, DP), lambda i: (i, 0)),
            # weights / biases: constant index_map -> VMEM-resident, and
            # single-buffered (no dead second copy of the weights).
            pl.BlockSpec((DP, HP), lambda i: (0, 0), **resident),
            pl.BlockSpec((1, HP), lambda i: (0, 0), **resident),
            pl.BlockSpec((HP, NP), lambda i: (0, 0), **resident),
            pl.BlockSpec((1, NP), lambda i: (0, 0), **resident),
        ],
        out_specs=pl.BlockSpec((TM, NP), lambda i: (i, 0)),
        compiler_params=pltpu.CompilerParams(
            dimension_semantics=("parallel",),
            vmem_limit_bytes=vmem_limit,
        ),
        cost_estimate=cost,
    )(xp, w1p, b1p, w2p, b2p)

    return out_padded[:B, :N]


def two_layer_net(x, w1, b1, w2, b2, *, compute_dtype=jnp.bfloat16, **kwargs):
    """Convenience one-shot wrapper (prepare + apply).  For repeated inference,
    call prepare_two_layer_params once and reuse the result."""
    params = prepare_two_layer_params(w1, b1, w2, b2, compute_dtype=compute_dtype)
    return two_layer_net_apply(params, x, **kwargs)


def _init_linear(key, fan_in, fan_out):
    # Mimic torch.nn.Linear default init: U(-1/sqrt(fan_in), 1/sqrt(fan_in)).
    kw, kb = jax.random.split(key)
    bound = 1.0 / jnp.sqrt(jnp.float32(fan_in))
    # stored as [in, out] so the kernel computes x @ W
    w = jax.random.uniform(kw, (fan_in, fan_out), jnp.float32, -bound, bound)
    b = jax.random.uniform(kb, (fan_out,), jnp.float32, -bound, bound)
    return w, b


if __name__ == "__main__":
    key = jax.random.PRNGKey(0)
    k_x, k_fc1, k_out = jax.random.split(key, 3)

    # Small shapes consistent with the module: batch=2, channels=4, spatial=16.
    B, C, Hs, Ws = 2, 4, 16, 16
    input_units = C * Hs * Ws          # 1024
    hidden_units = 32

    x = jax.random.normal(k_x, (B, C, Hs, Ws), jnp.float32)
    w1, b1 = _init_linear(k_fc1, input_units, hidden_units)
    w2, b2 = _init_linear(k_out, hidden_units, 10)

    # Pure-JAX reference (same semantics as the torch forward).
    x2d = x.reshape(B, -1)
    y_ref = jax.nn.sigmoid(x2d @ w1 + b1) @ w2 + b2

    # 1) Exact path: f32 streaming -> tight tolerance.
    y_exact = two_layer_net(x, w1, b1, w2, b2, compute_dtype=jnp.float32)
    jax.block_until_ready(y_exact)
    assert y_exact.shape == (B, 10)
    assert jnp.allclose(y_exact, y_ref, atol=1e-5, rtol=1e-5), "f32 mismatch"

    # 2) Fast path (default): weights padded/cast once, bf16 streaming.
    params = prepare_two_layer_params(w1, b1, w2, b2)   # done once at init
    y_fast = two_layer_net_apply(params, x)
    jax.block_until_ready(y_fast)
    assert y_fast.shape == (B, 10)
    assert jnp.allclose(y_fast, y_ref, atol=5e-2, rtol=5e-2), "bf16 mismatch"

    print("KERNEL_OK")
</pallas_src>

<mosaic_0001>
module attributes {stable_mosaic.version = 11 : i64} {
  func.func @_two_layer_kernel(%arg0: i32, %arg1: memref<16x1024xf32, #tpu.memory_space<vmem>>, %arg2: memref<1024x128xf32, #tpu.memory_space<vmem>>, %arg3: memref<1x128xf32, #tpu.memory_space<vmem>>, %arg4: memref<128x128xf32, #tpu.memory_space<vmem>>, %arg5: memref<1x128xf32, #tpu.memory_space<vmem>>, %arg6: memref<16x128xf32, #tpu.memory_space<vmem>>) attributes {dimension_semantics = [#tpu.dimension_semantics<parallel>], iteration_bounds = array<i64: 1>, scalar_prefetch = 0 : i64, scratch_operands = 0 : i64, tpu.core_type = #tpu.core_type<tc>, window_params = [{transform_indices = @transform_0, window_bounds = array<i64: 16, 1024>}, {pipeline_mode = #tpu.pipeline_mode<synchronous>, transform_indices = @transform_1, window_bounds = array<i64: 1024, 128>}, {pipeline_mode = #tpu.pipeline_mode<synchronous>, transform_indices = @transform_2, window_bounds = array<i64: 1, 128>}, {pipeline_mode = #tpu.pipeline_mode<synchronous>, transform_indices = @transform_3, window_bounds = array<i64: 128, 128>}, {pipeline_mode = #tpu.pipeline_mode<synchronous>, transform_indices = @transform_4, window_bounds = array<i64: 1, 128>}, {transform_indices = @transform_5, window_bounds = array<i64: 16, 128>}]} {
    %c0 = arith.constant 0 : index
    %c0_0 = arith.constant 0 : index
    %0 = vector.load %arg1[%c0, %c0_0] : memref<16x1024xf32, #tpu.memory_space<vmem>>, vector<16x1024xf32>
    %c0_1 = arith.constant 0 : index
    %c0_2 = arith.constant 0 : index
    %1 = vector.load %arg2[%c0_1, %c0_2] : memref<1024x128xf32, #tpu.memory_space<vmem>>, vector<1024x128xf32>
    %cst = arith.constant dense<0.000000e+00> : vector<16x128xf32>
    %2 = tpu.matmul %0, %1, %cst {dimension_numbers = #tpu.dot_dimension_numbers<[1], [0], [0], [1], [0, 0, 1, 1], [], []>} : vector<16x1024xf32>, vector<1024x128xf32>, vector<16x128xf32> -> vector<16x128xf32>
    %c0_3 = arith.constant 0 : index
    %c0_4 = arith.constant 0 : index
    %3 = vector.load %arg3[%c0_3, %c0_4] : memref<1x128xf32, #tpu.memory_space<vmem>>, vector<1x128xf32>
    %4 = vector.broadcast %3 : vector<1x128xf32> to vector<16x128xf32>
    %5 = arith.addf %2, %4 : vector<16x128xf32>
    %cst_5 = arith.constant 5.000000e-01 : f32
    %6 = vector.broadcast %cst_5 : f32 to vector<16x128xf32>
    %7 = arith.mulf %6, %5 : vector<16x128xf32>
    %8 = math.tanh %7 : vector<16x128xf32>
    %cst_6 = arith.constant 5.000000e-01 : f32
    %9 = vector.broadcast %cst_6 : f32 to vector<16x128xf32>
    %10 = arith.mulf %9, %8 : vector<16x128xf32>
    %cst_7 = arith.constant 5.000000e-01 : f32
    %11 = vector.broadcast %cst_7 : f32 to vector<16x128xf32>
    %12 = arith.addf %10, %11 : vector<16x128xf32>
    %c0_8 = arith.constant 0 : index
    %c0_9 = arith.constant 0 : index
    %13 = vector.load %arg4[%c0_8, %c0_9] : memref<128x128xf32, #tpu.memory_space<vmem>>, vector<128x128xf32>
    %cst_10 = arith.constant dense<0.000000e+00> : vector<16x128xf32>
    %14 = tpu.matmul %12, %13, %cst_10 {dimension_numbers = #tpu.dot_dimension_numbers<[1], [0], [0], [1], [0, 0, 1, 1], [], []>} : vector<16x128xf32>, vector<128x128xf32>, vector<16x128xf32> -> vector<16x128xf32>
    %c0_11 = arith.constant 0 : index
    %c0_12 = arith.constant 0 : index
    %15 = vector.load %arg5[%c0_11, %c0_12] : memref<1x128xf32, #tpu.memory_space<vmem>>, vector<1x128xf32>
    %16 = vector.broadcast %15 : vector<1x128xf32> to vector<16x128xf32>
    %17 = arith.addf %14, %16 : vector<16x128xf32>
    %c0_13 = arith.constant 0 : index
    %c0_14 = arith.constant 0 : index
    %18 = vector.load %arg6[%c0_13, %c0_14] : memref<16x128xf32, #tpu.memory_space<vmem>>, vector<16x128xf32>
    tpu.vector_store %arg6[%c0_13, %c0_14], %17 {strides = array<i32>} : memref<16x128xf32, #tpu.memory_space<vmem>>, vector<16x128xf32>,
    return
  }
  func.func @transform_0(%arg0: i32) -> (i32, i32) {
    %c0_i32 = arith.constant 0 : i32
    %c0_i32_0 = arith.constant 0 : i32
    return %arg0, %c0_i32 : i32, i32
  }
  func.func @transform_1(%arg0: i32) -> (i32, i32) {
    %c0_i32 = arith.constant 0 : i32
    %c0_i32_0 = arith.constant 0 : i32
    %c0_i32_1 = arith.constant 0 : i32
    return %c0_i32, %c0_i32_0 : i32, i32
  }
  func.func @transform_2(%arg0: i32) -> (i32, i32) {
    %c0_i32 = arith.constant 0 : i32
    %c0_i32_0 = arith.constant 0 : i32
    %c0_i32_1 = arith.constant 0 : i32
    return %c0_i32, %c0_i32_0 : i32, i32
  }
  func.func @transform_3(%arg0: i32) -> (i32, i32) {
    %c0_i32 = arith.constant 0 : i32
    %c0_i32_0 = arith.constant 0 : i32
    %c0_i32_1 = arith.constant 0 : i32
    return %c0_i32, %c0_i32_0 : i32, i32
  }
  func.func @transform_4(%arg0: i32) -> (i32, i32) {
    %c0_i32 = arith.constant 0 : i32
    %c0_i32_0 = arith.constant 0 : i32
    %c0_i32_1 = arith.constant 0 : i32
    return %c0_i32, %c0_i32_0 : i32, i32
  }
  func.func @transform_5(%arg0: i32) -> (i32, i32) {
    %c0_i32 = arith.constant 0 : i32
    %c0_i32_0 = arith.constant 0 : i32
    return %arg0, %c0_i32 : i32, i32
  }
}

</mosaic_0001>

<llo_original>
// kernel: tpu_custom_call.1
$region0: #{tpu_custom_call.1}
  #allocation0 [shape = 'u32[]', space=smem, size = 0x4, offset = 0x4, fixed_abs, tag = 'smem constant byte address 0x4 - core index']
  #allocation1 [shape = 'u32[144,128]{1,0:T(1,128)}', space=vmem, size = 0x12000, scoped, tag = 'internal scratch']
  %s0 = inlined_call_operand.hbm [shape: f32[16,1024], index: 0, kind: input, shape index: {}]
  %s1 = inlined_call_operand.hbm [shape: f32[1024,128], index: 1, kind: input, shape index: {}]
  %s2 = inlined_call_operand.vmem [shape: f32[1,128], index: 2, kind: input, shape index: {}]
  %s3 = inlined_call_operand.hbm [shape: f32[128,128], index: 3, kind: input, shape index: {}]
  %s4 = inlined_call_operand.vmem [shape: f32[1,128], index: 4, kind: input, shape index: {}]
  %s5 = inlined_call_operand.hbm [shape: f32[16,128], index: 5, kind: output, shape index: {}]
  %s6 = sld [smem:[#allocation0]]
  $region42: #{tpu_custom_call.1} parent=0
    _
  %s8 = ssub.s32 1, %s6
  %s9 = scalar_select 0, %s8, %s6
  $region1: #{tpu_custom_call.1} parent=0
    #allocation2 [shape = 'u8[65536]{0}', space=vmem, size = 0x10000, scoped, tag = 'input window, operand 0, single buffered']
    #allocation3 [shape = 's32[1]{0}', space=sflag, size = 0x4, scoped, tag = 'scoped memory for tpu_custom_call.1']
    #allocation4 [shape = 's32[1]{0}', space=sflag, size = 0x4, scoped, tag = 'scoped memory for tpu_custom_call.1']
    #allocation5 [shape = 'u8[524288]{0}', space=vmem, size = 0x80000, scoped, tag = 'input window, operand 1, single buffered']
    #allocation6 [shape = 's32[1]{0}', space=sflag, size = 0x4, scoped, tag = 'scoped memory for tpu_custom_call.1']
    #allocation7 [shape = 'u8[65536]{0}', space=vmem, size = 0x10000, scoped, tag = 'input window, operand 3, single buffered']
    #allocation8 [shape = 'u8[8192]{0}', space=vmem, size = 0x2000, scoped, tag = 'output window, operand 0, single buffered']
    %10 = vsyncpa [#allocation3], 0
    %11 = vsyncpa [#allocation6], 0
    %12 = vsyncpa [#allocation4], 0
    // Predicated region
    $region2: #{tpu_custom_call.1} parent=1 // pred_check
      _
    $region3: #{tpu_custom_call.1} parent=1 // pred_check_branch
      %14 = sbr.rel (0) target = $region5
    $region4: #{tpu_custom_call.1} parent=1 // pred_region
      %s16 = ssub.s32 2048, 2048
      %17 = vsyncadd [#allocation3], %s16
      %s18 = sshll.u32 [#allocation2], 4
      %s19 = int_to_ptr.vmem [resolvable:$true] %s18
      %24 = dma.hbm_to_vmem [thread:$0]  %s0, 2048, %s19, [#allocation3], 1024, 1024, 64
    $region5: #{tpu_custom_call.1} parent=1 // pred_fallthru
      _
    // Predicated region
    $region6: #{tpu_custom_call.1} parent=1 // pred_check
      _
    $region7: #{tpu_custom_call.1} parent=1 // pred_check_branch
      %26 = sbr.rel (0) target = $region9
    $region8: #{tpu_custom_call.1} parent=1 // pred_region
      %s28 = ssub.s32 16384, 16384
      %29 = vsyncadd [#allocation6], %s28
      %s30 = sshll.u32 [#allocation5], 4
      %s31 = int_to_ptr.vmem [resolvable:$true] %s30
      %36 = dma.hbm_to_vmem [thread:$0]  %s1, 16384, %s31, [#allocation6], 128, 128, 8
    $region9: #{tpu_custom_call.1} parent=1 // pred_fallthru
      _
    // Predicated region
    $region10: #{tpu_custom_call.1} parent=1 // pred_check
      _
    $region11: #{tpu_custom_call.1} parent=1 // pred_check_branch
      %38 = sbr.rel (0) target = $region13
    $region12: #{tpu_custom_call.1} parent=1 // pred_region
      _
    $region13: #{tpu_custom_call.1} parent=1 // pred_fallthru
      _
    // Predicated region
    $region14: #{tpu_custom_call.1} parent=1 // pred_check
      _
    $region15: #{tpu_custom_call.1} parent=1 // pred_check_branch
      %40 = sbr.rel (0) target = $region17
    $region16: #{tpu_custom_call.1} parent=1 // pred_region
      %s42 = ssub.s32 2048, 2048
      %43 = vsyncadd [#allocation6], %s42
      %s44 = sshll.u32 [#allocation7], 4
      %s45 = int_to_ptr.vmem [resolvable:$true] %s44
      %50 = dma.hbm_to_vmem [thread:$0]  %s3, 2048, %s45, [#allocation6], 128, 128, 8
    $region17: #{tpu_custom_call.1} parent=1 // pred_fallthru
      _
    // Predicated region
    $region18: #{tpu_custom_call.1} parent=1 // pred_check
      _
    $region19: #{tpu_custom_call.1} parent=1 // pred_check_branch
      %52 = sbr.rel (0) target = $region21
    $region20: #{tpu_custom_call.1} parent=1 // pred_region
      _
    $region21: #{tpu_custom_call.1} parent=1 // pred_fallthru
      _
    // Predicated region
    $region22: #{tpu_custom_call.1} parent=1 // pred_check
      _
    $region23: #{tpu_custom_call.1} parent=1 // pred_check_branch
      %54 = sbr.rel (0) target = $region25
    $region24: #{tpu_custom_call.1} parent=1 // pred_region
      %55 = dma.done [#allocation3], 2048
    $region25: #{tpu_custom_call.1} parent=1 // pred_fallthru
      _
    // Predicated region
    $region26: #{tpu_custom_call.1} parent=1 // pred_check
      _
    $region27: #{tpu_custom_call.1} parent=1 // pred_check_branch
      %57 = sbr.rel (0) target = $region29
    $region28: #{tpu_custom_call.1} parent=1 // pred_region
      %58 = dma.done [#allocation6], 16384
    $region29: #{tpu_custom_call.1} parent=1 // pred_fallthru
      _
    // Predicated region
    $region30: #{tpu_custom_call.1} parent=1 // pred_check
      _
    $region31: #{tpu_custom_call.1} parent=1 // pred_check_branch
      %60 = sbr.rel (0) target = $region33
    $region32: #{tpu_custom_call.1} parent=1 // pred_region
      %61 = dma.done [#allocation6], 2048
    $region33: #{tpu_custom_call.1} parent=1 // pred_fallthru
      _
    %v62 = vld [vmem:[#allocation2] sm:$0xff]
    %v63 = vld [vmem:[#allocation2 + $0x8] sm:$0xff]
    %v64 = vld [vmem:[#allocation2 + $0x10] sm:$0xff]
    %v65 = vld [vmem:[#allocation2 + $0x18] sm:$0xff]
    %v66 = vld [vmem:[#allocation2 + $0x20] sm:$0xff]
    %v67 = vld [vmem:[#allocation2 + $0x28] sm:$0xff]
    %v68 = vld [vmem:[#allocation2 + $0x30] sm:$0xff]
    %v69 = vld [vmem:[#allocation2 + $0x38] sm:$0xff]
    %v70 = vld [vmem:[#allocation2 + $0x40] sm:$0xff]
    %v71 = vld [vmem:[#allocation2 + $0x48] sm:$0xff]
    %v72 = vld [vmem:[#allocation2 + $0x50] sm:$0xff]
    %v73 = vld [vmem:[#allocation2 + $0x58] sm:$0xff]
    %v74 = vld [vmem:[#allocation2 + $0x60] sm:$0xff]
    %v75 = vld [vmem:[#allocation2 + $0x68] sm:$0xff]
    %v76 = vld [vmem:[#allocation2 + $0x70] sm:$0xff]
    %v77 = vld [vmem:[#allocation2 + $0x78] sm:$0xff]
    %v78 = vld [vmem:[#allocation5] sm:$0xff]
    %v79 = vld [vmem:[#allocation5 + $0x8] sm:$0xff]
    %v80 = vld [vmem:[#allocation5 + $0x10] sm:$0xff]
    %v81 = vld [vmem:[#allocation5 + $0x18] sm:$0xff]
    %v82 = vld [vmem:[#allocation5 + $0x20] sm:$0xff]
    %v83 = vld [vmem:[#allocation5 + $0x28] sm:$0xff]
    %v84 = vld [vmem:[#allocation5 + $0x30] sm:$0xff]
    %v85 = vld [vmem:[#allocation5 + $0x38] sm:$0xff]
    %v86 = vld [vmem:[#allocation5 + $0x40] sm:$0xff]
    %v87 = vld [vmem:[#allocation5 + $0x48] sm:$0xff]
    %v88 = vld [vmem:[#allocation5 + $0x50] sm:$0xff]
    %v89 = vld [vmem:[#allocation5 + $0x58] sm:$0xff]
    %v90 = vld [vmem:[#allocation5 + $0x60] sm:$0xff]
    %v91 = vld [vmem:[#allocation5 + $0x68] sm:$0xff]
    %v92 = vld [vmem:[#allocation5 + $0x70] sm:$0xff]
    %v93 = vld [vmem:[#allocation5 + $0x78] sm:$0xff]
    %v94 = vld [vmem:[#allocation5 + $0x80] sm:$0xff]
    %v95 = vld [vmem:[#allocation5 + $0x88] sm:$0xff]
    %v96 = vld [vmem:[#allocation5 + $0x90] sm:$0xff]
    %v97 = vld [vmem:[#allocation5 + $0x98] sm:$0xff]
    %v98 = vld [vmem:[#allocation5 + $0xa0] sm:$0xff]
    %v99 = vld [vmem:[#allocation5 + $0xa8] sm:$0xff]
    %v100 = vld [vmem:[#allocation5 + $0xb0] sm:$0xff]
    %v101 = vld [vmem:[#allocation5 + $0xb8] sm:$0xff]
    %v102 = vld [vmem:[#allocation5 + $0xc0] sm:$0xff]
    %v103 = vld [vmem:[#allocation5 + $0xc8] sm:$0xff]
    %v104 = vld [vmem:[#allocation5 + $0xd0] sm:$0xff]
    %v105 = vld [vmem:[#allocation5 + $0xd8] sm:$0xff]
    %v106 = vld [vmem:[#allocation5 + $0xe0] sm:$0xff]
    %v107 = vld [vmem:[#allocation5 + $0xe8] sm:$0xff]
    %v108 = vld [vmem:[#allocation5 + $0xf0] sm:$0xff]
    %v109 = vld [vmem:[#allocation5 + $0xf8] sm:$0xff]
    %v110 = vld [vmem:[#allocation5 + $0x100] sm:$0xff]
    %v111 = vld [vmem:[#allocation5 + $0x108] sm:$0xff]
    %v112 = vld [vmem:[#allocation5 + $0x110] sm:$0xff]
    %v113 = vld [vmem:[#allocation5 + $0x118] sm:$0xff]
    %v114 = vld [vmem:[#allocation5 + $0x120] sm:$0xff]
    %v115 = vld [vmem:[#allocation5 + $0x128] sm:$0xff]
    %v116 = vld [vmem:[#allocation5 + $0x130] sm:$0xff]
    %v117 = vld [vmem:[#allocation5 + $0x138] sm:$0xff]
    %v118 = vld [vmem:[#allocation5 + $0x140] sm:$0xff]
    %v119 = vld [vmem:[#allocation5 + $0x148] sm:$0xff]
    %v120 = vld [vmem:[#allocation5 + $0x150] sm:$0xff]
    %v121 = vld [vmem:[#allocation5 + $0x158] sm:$0xff]
    %v122 = vld [vmem:[#allocation5 + $0x160] sm:$0xff]
    %v123 = vld [vmem:[#allocation5 + $0x168] sm:$0xff]
    %v124 = vld [vmem:[#allocation5 + $0x170] sm:$0xff]
    %v125 = vld [vmem:[#allocation5 + $0x178] sm:$0xff]
    %v126 = vld [vmem:[#allocation5 + $0x180] sm:$0xff]
    %v127 = vld [vmem:[#allocation5 + $0x188] sm:$0xff]
    %v128 = vld [vmem:[#allocation5 + $0x190] sm:$0xff]
    %v129 = vld [vmem:[#allocation5 + $0x198] sm:$0xff]
    %v130 = vld [vmem:[#allocation5 + $0x1a0] sm:$0xff]
    %v131 = vld [vmem:[#allocation5 + $0x1a8] sm:$0xff]
    %v132 = vld [vmem:[#allocation5 + $0x1b0] sm:$0xff]
    %v133 = vld [vmem:[#allocation5 + $0x1b8] sm:$0xff]
    %v134 = vld [vmem:[#allocation5 + $0x1c0] sm:$0xff]
    %v135 = vld [vmem:[#allocation5 + $0x1c8] sm:$0xff]
    %v136 = vld [vmem:[#allocation5 + $0x1d0] sm:$0xff]
    %v137 = vld [vmem:[#allocation5 + $0x1d8] sm:$0xff]
    %v138 = vld [vmem:[#allocation5 + $0x1e0] sm:$0xff]
    %v139 = vld [vmem:[#allocation5 + $0x1e8] sm:$0xff]
    %v140 = vld [vmem:[#allocation5 + $0x1f0] sm:$0xff]
    %v141 = vld [vmem:[#allocation5 + $0x1f8] sm:$0xff]
    %v142 = vld [vmem:[#allocation5 + $0x200] sm:$0xff]
    %v143 = vld [vmem:[#allocation5 + $0x208] sm:$0xff]
    %v144 = vld [vmem:[#allocation5 + $0x210] sm:$0xff]
    %v145 = vld [vmem:[#allocation5 + $0x218] sm:$0xff]
    %v146 = vld [vmem:[#allocation5 + $0x220] sm:$0xff]
    %v147 = vld [vmem:[#allocation5 + $0x228] sm:$0xff]
    %v148 = vld [vmem:[#allocation5 + $0x230] sm:$0xff]
    %v149 = vld [vmem:[#allocation5 + $0x238] sm:$0xff]
    %v150 = vld [vmem:[#allocation5 + $0x240] sm:$0xff]
    %v151 = vld [vmem:[#allocation5 + $0x248] sm:$0xff]
    %v152 = vld [vmem:[#allocation5 + $0x250] sm:$0xff]
    %v153 = vld [vmem:[#allocation5 + $0x258] sm:$0xff]
    %v154 = vld [vmem:[#allocation5 + $0x260] sm:$0xff]
    %v155 = vld [vmem:[#allocation5 + $0x268] sm:$0xff]
    %v156 = vld [vmem:[#allocation5 + $0x270] sm:$0xff]
    %v157 = vld [vmem:[#allocation5 + $0x278] sm:$0xff]
    %v158 = vld [vmem:[#allocation5 + $0x280] sm:$0xff]
    %v159 = vld [vmem:[#allocation5 + $0x288] sm:$0xff]
    %v160 = vld [vmem:[#allocation5 + $0x290] sm:$0xff]
    %v161 = vld [vmem:[#allocation5 + $0x298] sm:$0xff]
    %v162 = vld [vmem:[#allocation5 + $0x2a0] sm:$0xff]
    %v163 = vld [vmem:[#allocation5 + $0x2a8] sm:$0xff]
    %v164 = vld [vmem:[#allocation5 + $0x2b0] sm:$0xff]
    %v165 = vld [vmem:[#allocation5 + $0x2b8] sm:$0xff]
    %v166 = vld [vmem:[#allocation5 + $0x2c0] sm:$0xff]
    %v167 = vld [vmem:[#allocation5 + $0x2c8] sm:$0xff]
    %v168 = vld [vmem:[#allocation5 + $0x2d0] sm:$0xff]
    %v169 = vld [vmem:[#allocation5 + $0x2d8] sm:$0xff]
    %v170 = vld [vmem:[#allocation5 + $0x2e0] sm:$0xff]
    %v171 = vld [vmem:[#allocation5 + $0x2e8] sm:$0xff]
    %v172 = vld [vmem:[#allocation5 + $0x2f0] sm:$0xff]
    %v173 = vld [vmem:[#allocation5 + $0x2f8] sm:$0xff]
    %v174 = vld [vmem:[#allocation5 + $0x300] sm:$0xff]
    %v175 = vld [vmem:[#allocation5 + $0x308] sm:$0xff]
    %v176 = vld [vmem:[#allocation5 + $0x310] sm:$0xff]
    %v177 = vld [vmem:[#allocation5 + $0x318] sm:$0xff]
    %v178 = vld [vmem:[#allocation5 + $0x320] sm:$0xff]
    %v179 = vld [vmem:[#allocation5 + $0x328] sm:$0xff]
    %v180 = vld [vmem:[#allocation5 + $0x330] sm:$0xff]
    %v181 = vld [vmem:[#allocation5 + $0x338] sm:$0xff]
    %v182 = vld [vmem:[#allocation5 + $0x340] sm:$0xff]
    %v183 = vld [vmem:[#allocation5 + $0x348] sm:$0xff]
    %v184 = vld [vmem:[#allocation5 + $0x350] sm:$0xff]
    %v185 = vld [vmem:[#allocation5 + $0x358] sm:$0xff]
    %v186 = vld [vmem:[#allocation5 + $0x360] sm:$0xff]
    %v187 = vld [vmem:[#allocation5 + $0x368] sm:$0xff]
    %v188 = vld [vmem:[#allocation5 + $0x370] sm:$0xff]
    %v189 = vld [vmem:[#allocation5 + $0x378] sm:$0xff]
    %v190 = vld [vmem:[#allocation5 + $0x380] sm:$0xff]
    %v191 = vld [vmem:[#allocation5 + $0x388] sm:$0xff]
    %v192 = vld [vmem:[#allocation5 + $0x390] sm:$0xff]
    %v193 = vld [vmem:[#allocation5 + $0x398] sm:$0xff]
    %v194 = vld [vmem:[#allocation5 + $0x3a0] sm:$0xff]
    %v195 = vld [vmem:[#allocation5 + $0x3a8] sm:$0xff]
    %v196 = vld [vmem:[#allocation5 + $0x3b0] sm:$0xff]
    %v197 = vld [vmem:[#allocation5 + $0x3b8] sm:$0xff]
    %v198 = vld [vmem:[#allocation5 + $0x3c0] sm:$0xff]
    %v199 = vld [vmem:[#allocation5 + $0x3c8] sm:$0xff]
    %v200 = vld [vmem:[#allocation5 + $0x3d0] sm:$0xff]
    %v201 = vld [vmem:[#allocation5 + $0x3d8] sm:$0xff]
    %v202 = vld [vmem:[#allocation5 + $0x3e0] sm:$0xff]
    %v203 = vld [vmem:[#allocation5 + $0x3e8] sm:$0xff]
    %v204 = vld [vmem:[#allocation5 + $0x3f0] sm:$0xff]
    %v205 = vld [vmem:[#allocation5 + $0x3f8] sm:$0xff]
    %v206 = vld [vmem:[%s2] sm:$0x1]
    %v208 = vlaneseq
    %v209 = vshrl.u32 %v208, 7
    %v210 = vsub.s32 0, %v209
    %v211 = vrot.slane %v206, %v210
    %213 = vmatprep.subr.mxu0 0.0
    %214 = vmatpush1.msra.mxu0 %v78
    %215 = vmatprep.subr.mxu0 0.0
    %216 = vmatpush1.msra.mxu0 %v79
    %217 = vmatprep.subr.mxu0 0.0
    %218 = vmatpush1.msra.mxu0 %v80
    %219 = vmatprep.subr.mxu0 0.0
    %220 = vmatpush1.msra.mxu0 %v81
    %221 = vmatprep.subr.mxu0 0.0
    %222 = vmatpush1.msra.mxu0 %v82
    %223 = vmatprep.subr.mxu0 0.0
    %224 = vmatpush1.msra.mxu0 %v83
    %225 = vmatprep.subr.mxu0 0.0
    %226 = vmatpush1.msra.mxu0 %v84
    %227 = vmatprep.subr.mxu0 0.0
    %228 = vmatpush1.msra.mxu0 %v85
    %229 = vmatprep.subr.mxu0 0.0
    %230 = vmatpush1.msra.mxu0 %v86
    %231 = vmatprep.subr.mxu0 0.0
    %232 = vmatpush1.msra.mxu0 %v87
    %233 = vmatprep.subr.mxu0 0.0
    %234 = vmatpush1.msra.mxu0 %v88
    %235 = vmatprep.subr.mxu0 0.0
    %236 = vmatpush1.msra.mxu0 %v89
    %237 = vmatprep.subr.mxu0 0.0
    %238 = vmatpush1.msra.mxu0 %v90
    %239 = vmatprep.subr.mxu0 0.0
    %240 = vmatpush1.msra.mxu0 %v91
    %241 = vmatprep.subr.mxu0 0.0
    %242 = vmatpush1.msra.mxu0 %v92
    %243 = vmatprep.subr.mxu0 0.0
    %244 = vmatpush1.msra.mxu0 %v93
    %245 = vmatprep.subr.mxu0 0.0
    %246 = vmatpush1.msra.mxu0 %v94
    %247 = vmatprep.subr.mxu0 0.0
    %248 = vmatpush1.msra.mxu0 %v95
    %249 = vmatprep.subr.mxu0 0.0
    %250 = vmatpush1.msra.mxu0 %v96
    %251 = vmatprep.subr.mxu0 0.0
    %252 = vmatpush1.msra.mxu0 %v97
    %253 = vmatprep.subr.mxu0 0.0
    %254 = vmatpush1.msra.mxu0 %v98
    %255 = vmatprep.subr.mxu0 0.0
    %256 = vmatpush1.msra.mxu0 %v99
    %257 = vmatprep.subr.mxu0 0.0
    %258 = vmatpush1.msra.mxu0 %v100
    %259 = vmatprep.subr.mxu0 0.0
    %260 = vmatpush1.msra.mxu0 %v101
    %261 = vmatprep.subr.mxu0 0.0
    %262 = vmatpush1.msra.mxu0 %v102
    %263 = vmatprep.subr.mxu0 0.0
    %264 = vmatpush1.msra.mxu0 %v103
    %265 = vmatprep.subr.mxu0 0.0
    %266 = vmatpush1.msra.mxu0 %v104
    %267 = vmatprep.subr.mxu0 0.0
    %268 = vmatpush1.msra.mxu0 %v105
    %269 = vmatprep.subr.mxu0 0.0
    %270 = vmatpush1.msra.mxu0 %v106
    %271 = vmatprep.subr.mxu0 0.0
    %272 = vmatpush1.msra.mxu0 %v107
    %273 = vmatprep.subr.mxu0 0.0
    %274 = vmatpush1.msra.mxu0 %v108
    %275 = vmatprep.subr.mxu0 0.0
    %276 = vmatpush1.msra.mxu0 %v109
    %277 = vmatprep.mubr.f32.mxu0 %v63
    %278 = vmatmul.mubr.f32.gmra.mrb[0].mxu0 %v62
    %v279 = vpop.f32.mrb[0].mxu0
    %v280 = vadd.f32 %v211, %v279
    %v281 = vpop.f32.mrb[0].mxu0
    %282 = vmatprep.mubr.f32.mxu0 %v71
    %283 = vmatmul.mubr.f32.gmra.mrb[0].mxu0 %v70
    %v284 = vpop.f32.mrb[0].mxu0
    %v285 = vadd.f32 %v211, %v284
    %v286 = vpop.f32.mrb[0].mxu0
    %287 = vdwg.mxu0
    %288 = vmatprep.subr.mxu0 0.0
    %289 = vmatpush1.msra.mxu0 %v110
    %290 = vmatprep.subr.mxu0 0.0
    %291 = vmatpush1.msra.mxu0 %v111
    %292 = vmatprep.subr.mxu0 0.0
    %293 = vmatpush1.msra.mxu0 %v112
    %294 = vmatprep.subr.mxu0 0.0
    %295 = vmatpush1.msra.mxu0 %v113
    %296 = vmatprep.subr.mxu0 0.0
    %297 = vmatpush1.msra.mxu0 %v114
    %298 = vmatprep.subr.mxu0 0.0
    %299 = vmatpush1.msra.mxu0 %v115
    %300 = vmatprep.subr.mxu0 0.0
    %301 = vmatpush1.msra.mxu0 %v116
    %302 = vmatprep.subr.mxu0 0.0
    %303 = vmatpush1.msra.mxu0 %v117
    %304 = vmatprep.subr.mxu0 0.0
    %305 = vmatpush1.msra.mxu0 %v118
    %306 = vmatprep.subr.mxu0 0.0
    %307 = vmatpush1.msra.mxu0 %v119
    %308 = vmatprep.subr.mxu0 0.0
    %309 = vmatpush1.msra.mxu0 %v120
    %310 = vmatprep.subr.mxu0 0.0
    %311 = vmatpush1.msra.mxu0 %v121
    %312 = vmatprep.subr.mxu0 0.0
    %313 = vmatpush1.msra.mxu0 %v122
    %314 = vmatprep.subr.mxu0 0.0
    %315 = vmatpush1.msra.mxu0 %v123
    %316 = vmatprep.subr.mxu0 0.0
    %317 = vmatpush1.msra.mxu0 %v124
    %318 = vmatprep.subr.mxu0 0.0
    %319 = vmatpush1.msra.mxu0 %v125
    %320 = vmatprep.subr.mxu0 0.0
    %321 = vmatpush1.msra.mxu0 %v126
    %322 = vmatprep.subr.mxu0 0.0
    %323 = vmatpush1.msra.mxu0 %v127
    %324 = vmatprep.subr.mxu0 0.0
    %325 = vmatpush1.msra.mxu0 %v128
    %326 = vmatprep.subr.mxu0 0.0
    %327 = vmatpush1.msra.mxu0 %v129
    %328 = vmatprep.subr.mxu0 0.0
    %329 = vmatpush1.msra.mxu0 %v130
    %330 = vmatprep.subr.mxu0 0.0
    %331 = vmatpush1.msra.mxu0 %v131
    %332 = vmatprep.subr.mxu0 0.0
    %333 = vmatpush1.msra.mxu0 %v132
    %334 = vmatprep.subr.mxu0 0.0
    %335 = vmatpush1.msra.mxu0 %v133
    %336 = vmatprep.subr.mxu0 0.0
    %337 = vmatpush1.msra.mxu0 %v134
    %338 = vmatprep.subr.mxu0 0.0
    %339 = vmatpush1.msra.mxu0 %v135
    %340 = vmatprep.subr.mxu0 0.0
    %341 = vmatpush1.msra.mxu0 %v136
    %342 = vmatprep.subr.mxu0 0.0
    %343 = vmatpush1.msra.mxu0 %v137
    %344 = vmatprep.subr.mxu0 0.0
    %345 = vmatpush1.msra.mxu0 %v138
    %346 = vmatprep.subr.mxu0 0.0
    %347 = vmatpush1.msra.mxu0 %v139
    %348 = vmatprep.subr.mxu0 0.0
    %349 = vmatpush1.msra.mxu0 %v140
    %350 = vmatprep.subr.mxu0 0.0
    %351 = vmatpush1.msra.mxu0 %v141
    %352 = vmatprep.mubr.f32.mxu0 %v65
    %353 = vmatmul.mubr.f32.gmra.mrb[0].mxu0 %v64
    %v354 = vpop.f32.mrb[0].mxu0
    %v355 = vadd.f32 %v280, %v354
    %v356 = vpop.f32.mrb[0].mxu0
    %357 = vmatprep.mubr.f32.mxu0 %v73
    %358 = vmatmul.mubr.f32.gmra.mrb[0].mxu0 %v72
    %v359 = vpop.f32.mrb[0].mxu0
    %v360 = vadd.f32 %v285, %v359
    %v361 = vpop.f32.mrb[0].mxu0
    %362 = vdwg.mxu0
    %363 = vmatprep.subr.mxu0 0.0
    %364 = vmatpush1.msra.mxu0 %v142
    %365 = vmatprep.subr.mxu0 0.0
    %366 = vmatpush1.msra.mxu0 %v143
    %367 = vmatprep.subr.mxu0 0.0
    %368 = vmatpush1.msra.mxu0 %v144
    %369 = vmatprep.subr.mxu0 0.0
    %370 = vmatpush1.msra.mxu0 %v145
    %371 = vmatprep.subr.mxu0 0.0
    %372 = vmatpush1.msra.mxu0 %v146
    %373 = vmatprep.subr.mxu0 0.0
    %374 = vmatpush1.msra.mxu0 %v147
    %375 = vmatprep.subr.mxu0 0.0
    %376 = vmatpush1.msra.mxu0 %v148
    %377 = vmatprep.subr.mxu0 0.0
    %378 = vmatpush1.msra.mxu0 %v149
    %379 = vmatprep.subr.mxu0 0.0
    %380 = vmatpush1.msra.mxu0 %v150
    %381 = vmatprep.subr.mxu0 0.0
    %382 = vmatpush1.msra.mxu0 %v151
    %383 = vmatprep.subr.mxu0 0.0
    %384 = vmatpush1.msra.mxu0 %v152
    %385 = vmatprep.subr.mxu0 0.0
    %386 = vmatpush1.msra.mxu0 %v153
    %387 = vmatprep.subr.mxu0 0.0
    %388 = vmatpush1.msra.mxu0 %v154
    %389 = vmatprep.subr.mxu0 0.0
    %390 = vmatpush1.msra.mxu0 %v155
    %391 = vmatprep.subr.mxu0 0.0
    %392 = vmatpush1.msra.mxu0 %v156
    %393 = vmatprep.subr.mxu0 0.0
    %394 = vmatpush1.msra.mxu0 %v157
    %395 = vmatprep.subr.mxu0 0.0
    %396 = vmatpush1.msra.mxu0 %v158
    %397 = vmatprep.subr.mxu0 0.0
    %398 = vmatpush1.msra.mxu0 %v159
    %399 = vmatprep.subr.mxu0 0.0
    %400 = vmatpush1.msra.mxu0 %v160
    %401 = vmatprep.subr.mxu0 0.0
    %402 = vmatpush1.msra.mxu0 %v161
    %403 = vmatprep.subr.mxu0 0.0
    %404 = vmatpush1.msra.mxu0 %v162
    %405 = vmatprep.subr.mxu0 0.0
    %406 = vmatpush1.msra.mxu0 %v163
    %407 = vmatprep.subr.mxu0 0.0
    %408 = vmatpush1.msra.mxu0 %v164
    %409 = vmatprep.subr.mxu0 0.0
    %410 = vmatpush1.msra.mxu0 %v165
    %411 = vmatprep.subr.mxu0 0.0
    %412 = vmatpush1.msra.mxu0 %v166
    %413 = vmatprep.subr.mxu0 0.0
    %414 = vmatpush1.msra.mxu0 %v167
    %415 = vmatprep.subr.mxu0 0.0
    %416 = vmatpush1.msra.mxu0 %v168
    %417 = vmatprep.subr.mxu0 0.0
    %418 = vmatpush1.msra.mxu0 %v169
    %419 = vmatprep.subr.mxu0 0.0
    %420 = vmatpush1.msra.mxu0 %v170
    %421 = vmatprep.subr.mxu0 0.0
    %422 = vmatpush1.msra.mxu0 %v171
    %423 = vmatprep.subr.mxu0 0.0
    %424 = vmatpush1.msra.mxu0 %v172
    %425 = vmatprep.subr.mxu0 0.0
    %426 = vmatpush1.msra.mxu0 %v173
    %427 = vmatprep.mubr.f32.mxu0 %v67
    %428 = vmatmul.mubr.f32.gmra.mrb[0].mxu0 %v66
    %v429 = vpop.f32.mrb[0].mxu0
    %v430 = vadd.f32 %v355, %v429
    %v431 = vpop.f32.mrb[0].mxu0
    %432 = vmatprep.mubr.f32.mxu0 %v75
    %433 = vmatmul.mubr.f32.gmra.mrb[0].mxu0 %v74
    %v434 = vpop.f32.mrb[0].mxu0
    %v435 = vadd.f32 %v360, %v434
    %v436 = vpop.f32.mrb[0].mxu0
    %437 = vdwg.mxu0
    %438 = vmatprep.subr.mxu0 0.0
    %439 = vmatpush1.msra.mxu0 %v174
    %440 = vmatprep.subr.mxu0 0.0
    %441 = vmatpush1.msra.mxu0 %v175
    %442 = vmatprep.subr.mxu0 0.0
    %443 = vmatpush1.msra.mxu0 %v176
    %444 = vmatprep.subr.mxu0 0.0
    %445 = vmatpush1.msra.mxu0 %v177
    %446 = vmatprep.subr.mxu0 0.0
    %447 = vmatpush1.msra.mxu0 %v178
    %448 = vmatprep.subr.mxu0 0.0
    %449 = vmatpush1.msra.mxu0 %v179
    %450 = vmatprep.subr.mxu0 0.0
    %451 = vmatpush1.msra.mxu0 %v180
    %452 = vmatprep.subr.mxu0 0.0
    %453 = vmatpush1.msra.mxu0 %v181
    %454 = vmatprep.subr.mxu0 0.0
    %455 = vmatpush1.msra.mxu0 %v182
    %456 = vmatprep.subr.mxu0 0.0
    %457 = vmatpush1.msra.mxu0 %v183
    %458 = vmatprep.subr.mxu0 0.0
    %459 = vmatpush1.msra.mxu0 %v184
    %460 = vmatprep.subr.mxu0 0.0
    %461 = vmatpush1.msra.mxu0 %v185
    %462 = vmatprep.subr.mxu0 0.0
    %463 = vmatpush1.msra.mxu0 %v186
    %464 = vmatprep.subr.mxu0 0.0
    %465 = vmatpush1.msra.mxu0 %v187
    %466 = vmatprep.subr.mxu0 0.0
    %467 = vmatpush1.msra.mxu0 %v188
    %468 = vmatprep.subr.mxu0 0.0
    %469 = vmatpush1.msra.mxu0 %v189
    %470 = vmatprep.subr.mxu0 0.0
    %471 = vmatpush1.msra.mxu0 %v190
    %472 = vmatprep.subr.mxu0 0.0
    %473 = vmatpush1.msra.mxu0 %v191
    %474 = vmatprep.subr.mxu0 0.0
    %475 = vmatpush1.msra.mxu0 %v192
    %476 = vmatprep.subr.mxu0 0.0
    %477 = vmatpush1.msra.mxu0 %v193
    %478 = vmatprep.subr.mxu0 0.0
    %479 = vmatpush1.msra.mxu0 %v194
    %480 = vmatprep.subr.mxu0 0.0
    %481 = vmatpush1.msra.mxu0 %v195
    %482 = vmatprep.subr.mxu0 0.0
    %483 = vmatpush1.msra.mxu0 %v196
    %484 = vmatprep.subr.mxu0 0.0
    %485 = vmatpush1.msra.mxu0 %v197
    %486 = vmatprep.subr.mxu0 0.0
    %487 = vmatpush1.msra.mxu0 %v198
    %488 = vmatprep.subr.mxu0 0.0
    %489 = vmatpush1.msra.mxu0 %v199
    %490 = vmatprep.subr.mxu0 0.0
    %491 = vmatpush1.msra.mxu0 %v200
    %492 = vmatprep.subr.mxu0 0.0
    %493 = vmatpush1.msra.mxu0 %v201
    %494 = vmatprep.subr.mxu0 0.0
    %495 = vmatpush1.msra.mxu0 %v202
    %496 = vmatprep.subr.mxu0 0.0
    %497 = vmatpush1.msra.mxu0 %v203
    %498 = vmatprep.subr.mxu0 0.0
    %499 = vmatpush1.msra.mxu0 %v204
    %500 = vmatprep.subr.mxu0 0.0
    %501 = vmatpush1.msra.mxu0 %v205
    %502 = vmatprep.mubr.f32.mxu0 %v69
    %503 = vmatmul.mubr.f32.gmra.mrb[0].mxu0 %v68
    %v504 = vpop.f32.mrb[0].mxu0
    %v505 = vadd.f32 %v430, %v504
    %v506 = vpop.f32.mrb[0].mxu0
    %507 = vmatprep.mubr.f32.mxu0 %v77
    %508 = vmatmul.mubr.f32.gmra.mrb[0].mxu0 %v76
    %v509 = vpop.f32.mrb[0].mxu0
    %v510 = vadd.f32 %v435, %v509
    %v511 = vpop.f32.mrb[0].mxu0
    %512 = vdwg.mxu0
    %v513 = vmul.f32 %v505, 0.5
    %v514 = vmul.f32 %v510, 0.5
    %v515 = vtanh.pop %v513
    %v516 = vtanh.pop %v514
    %v517 = vmul.f32 %v515, 0.5
    %v518 = vmul.f32 %v516, 0.5
    %v519 = vadd.f32 %v517, 0.5
    %v520 = vadd.f32 %v518, 0.5
    %v521 = vld [vmem:[#allocation7] sm:$0xff]
    %v522 = vld [vmem:[#allocation7 + $0x8] sm:$0xff]
    %v523 = vld [vmem:[#allocation7 + $0x10] sm:$0xff]
    %v524 = vld [vmem:[#allocation7 + $0x18] sm:$0xff]
    %v525 = vld [vmem:[#allocation7 + $0x20] sm:$0xff]
    %v526 = vld [vmem:[#allocation7 + $0x28] sm:$0xff]
    %v527 = vld [vmem:[#allocation7 + $0x30] sm:$0xff]
    %v528 = vld [vmem:[#allocation7 + $0x38] sm:$0xff]
    %v529 = vld [vmem:[#allocation7 + $0x40] sm:$0xff]
    %v530 = vld [vmem:[#allocation7 + $0x48] sm:$0xff]
    %v531 = vld [vmem:[#allocation7 + $0x50] sm:$0xff]
    %v532 = vld [vmem:[#allocation7 + $0x58] sm:$0xff]
    %v533 = vld [vmem:[#allocation7 + $0x60] sm:$0xff]
    %v534 = vld [vmem:[#allocation7 + $0x68] sm:$0xff]
    %v535 = vld [vmem:[#allocation7 + $0x70] sm:$0xff]
    %v536 = vld [vmem:[#allocation7 + $0x78] sm:$0xff]
    %v537 = vld [vmem:[%s4] sm:$0x1]
    %v539 = vlaneseq
    %v540 = vshrl.u32 %v539, 7
    %v541 = vsub.s32 0, %v540
    %v542 = vrot.slane %v537, %v541
    %544 = vmatprep.subr.mxu0 0.0
    %545 = vmatpush1.msra.mxu0 %v521
    %546 = vmatprep.subr.mxu0 0.0
    %547 = vmatpush1.msra.mxu0 %v522
    %548 = vmatprep.subr.mxu0 0.0
    %549 = vmatpush1.msra.mxu0 %v523
    %550 = vmatprep.subr.mxu0 0.0
    %551 = vmatpush1.msra.mxu0 %v524
    %552 = vmatprep.subr.mxu0 0.0
    %553 = vmatpush1.msra.mxu0 %v525
    %554 = vmatprep.subr.mxu0 0.0
    %555 = vmatpush1.msra.mxu0 %v526
    %556 = vmatprep.subr.mxu0 0.0
    %557 = vmatpush1.msra.mxu0 %v527
    %558 = vmatprep.subr.mxu0 0.0
    %559 = vmatpush1.msra.mxu0 %v528
    %560 = vmatprep.subr.mxu0 0.0
    %561 = vmatpush1.msra.mxu0 %v529
    %562 = vmatprep.subr.mxu0 0.0
    %563 = vmatpush1.msra.mxu0 %v530
    %564 = vmatprep.subr.mxu0 0.0
    %565 = vmatpush1.msra.mxu0 %v531
    %566 = vmatprep.subr.mxu0 0.0
    %567 = vmatpush1.msra.mxu0 %v532
    %568 = vmatprep.subr.mxu0 0.0
    %569 = vmatpush1.msra.mxu0 %v533
    %570 = vmatprep.subr.mxu0 0.0
    %571 = vmatpush1.msra.mxu0 %v534
    %572 = vmatprep.subr.mxu0 0.0
    %573 = vmatpush1.msra.mxu0 %v535
    %574 = vmatprep.subr.mxu0 0.0
    %575 = vmatpush1.msra.mxu0 %v536
    %576 = vmatprep.subr.mxu0 0.0
    %577 = vmatpush1.msra.mxu0 0.0
    %578 = vmatprep.subr.mxu0 0.0
    %579 = vmatpush1.msra.mxu0 0.0
    %580 = vmatprep.subr.mxu0 0.0
    %581 = vmatpush1.msra.mxu0 0.0
    %582 = vmatprep.subr.mxu0 0.0
    %583 = vmatpush1.msra.mxu0 0.0
    %584 = vmatprep.subr.mxu0 0.0
    %585 = vmatpush1.msra.mxu0 0.0
    %586 = vmatprep.subr.mxu0 0.0
    %587 = vmatpush1.msra.mxu0 0.0
    %588 = vmatprep.subr.mxu0 0.0
    %589 = vmatpush1.msra.mxu0 0.0
    %590 = vmatprep.subr.mxu0 0.0
    %591 = vmatpush1.msra.mxu0 0.0
    %592 = vmatprep.subr.mxu0 0.0
    %593 = vmatpush1.msra.mxu0 0.0
    %594 = vmatprep.subr.mxu0 0.0
    %595 = vmatpush1.msra.mxu0 0.0
    %596 = vmatprep.subr.mxu0 0.0
    %597 = vmatpush1.msra.mxu0 0.0
    %598 = vmatprep.subr.mxu0 0.0
    %599 = vmatpush1.msra.mxu0 0.0
    %600 = vmatprep.subr.mxu0 0.0
    %601 = vmatpush1.msra.mxu0 0.0
    %602 = vmatprep.subr.mxu0 0.0
    %603 = vmatpush1.msra.mxu0 0.0
    %604 = vmatprep.subr.mxu0 0.0
    %605 = vmatpush1.msra.mxu0 0.0
    %606 = vmatprep.subr.mxu0 0.0
    %607 = vmatpush1.msra.mxu0 0.0
    %608 = vmatprep.mubr.f32.mxu0 0.0
    %609 = vmatmul.mubr.f32.gmra.mrb[0].mxu0 %v519
    %v610 = vpop.f32.mrb[0].mxu0
    %v611 = vadd.f32 %v542, %v610
    %v612 = vpop.f32.mrb[0].mxu0
    %613 = vmatprep.mubr.f32.mxu0 0.0
    %614 = vmatmul.mubr.f32.gmra.mrb[0].mxu0 %v520
    %v615 = vpop.f32.mrb[0].mxu0
    %v616 = vadd.f32 %v542, %v615
    %v617 = vpop.f32.mrb[0].mxu0
    %618 = vdwg.mxu0
    %619 = vst [vmem:[#allocation8] sm:$0xff] %v611
    %620 = vst [vmem:[#allocation8 + $0x8] sm:$0xff] %v616
    // Predicated region
    $region34: #{tpu_custom_call.1} parent=1 // pred_check
      _
    $region35: #{tpu_custom_call.1} parent=1 // pred_check_branch
      %622 = sbr.rel (0) target = $region37
    $region36: #{tpu_custom_call.1} parent=1 // pred_region
      %s624 = ssub.s32 256, 256
      %625 = vsyncadd [#allocation4], %s624
      %s626 = sshll.u32 [#allocation8], 4
      %s627 = int_to_ptr.vmem [resolvable:$true] %s626
      %632 = dma.vmem_to_hbm [thread:$0]  %s627, 256, %s5, [#allocation4], 128, 128, 8
    $region37: #{tpu_custom_call.1} parent=1 // pred_fallthru
      _
    // Predicated region
    $region38: #{tpu_custom_call.1} parent=1 // pred_check
      _
    $region39: #{tpu_custom_call.1} parent=1 // pred_check_branch
      %634 = sbr.rel (0) target = $region41
    $region40: #{tpu_custom_call.1} parent=1 // pred_region
      %635 = dma.done [#allocation4], 256
    $region41: #{tpu_custom_call.1} parent=1 // pred_fallthru
      _
    %636 = vsyncpa [#allocation3], 1
    %637 = vsyncpa [#allocation6], 1
    %638 = vsyncpa [#allocation4], 1

</llo_original>
